<compile_context>
chip_gen: v5e
topology: v5e:2x2
jax: 0.10.0
libtpu: 0.0.40
codegen_flags: <defaults>
</compile_context>

<pallas_src>
import functools

import jax
import jax.numpy as jnp
from jax import lax
from jax.experimental import pallas as pl
from jax.experimental.pallas import tpu as pltpu  # noqa: F401  (TPU backend assumed)

# ------------------------- small synthetic config -------------------------
B, S = 2, 8            # batch, max_length
H = 32                 # config.hidden_size
V = 64                 # config.vocab_size
T = 5                  # len(token_types)
M = 16                 # meta_embedding_dim
META_VOCAB = 4         # vocab of token_type_ids feeding the meta embedding
N = B * S
REDUCTION = "mean"     # self.reduction

LANES = 128            # lane-dense output slab width
COL_HID = LANES - H    # hidden passthrough occupies cols [96, 128)
assert V + T <= COL_HID, "heads + hidden passthrough must fit in one 128-lane slab"

# ---- packed weight-slab A row layout (width H) ----
RA_TOK = 0                       # rows [0, V)      : token embedding table
RA_W1 = V                        # rows [V, V+H)    : encoder w1
RA_W2 = V + H                    # rows [V+H, V+2H) : encoder w2
RA_B1 = V + 2 * H                # row              : encoder b1
RA_B2 = V + 2 * H + 1            # row              : encoder b2
RA_ROWS = ((RA_B2 + 1 + 7) // 8) * 8            # 136 (sublane-aligned)

# ---- packed weight-slab B row layout (width LANES) ----
MVPAD = 8                        # meta one-hot / meta head rows padded to a sublane group
RB_WH = 0                        # rows [0, H)      : hidden -> (lm | det | eye) head
RB_META = H                      # rows [H, H+MVPAD): token_type -> det head (meta_emb @ w_det_m)
RB_BIAS = H + MVPAD              # row              : packed bias (b_lm | b_det | 0)
RB_ROWS = ((RB_BIAS + 1 + 7) // 8) * 8          # 48


# ------------------------------ fused Pallas kernel ------------------------------
def make_joint_kernel(reduction):
    """Embedding gather + encoder + (MslmLoss head+CE) + (DetectionModel head + CE)."""

    def kernel(tok_ref, wA_ref, wB_ref, out_ref):
        tok = tok_ref[...]                                # [N,4] f32 metadata slab
        ids = tok[:, 0:1].astype(jnp.int32)               # input ids == LM labels
        tts = tok[:, 1:2].astype(jnp.int32)               # token type ids
        det_col = tok[:, 2:3].astype(jnp.int32)           # det label column (= labels + V)
        wts = tok[:, 3:4]                                  # per-token weights

        # ---- embedding gathers as one-hot MXU matmuls (tables live in VMEM) ----
        iota_v = lax.broadcasted_iota(jnp.int32, (N, V), 1)
        onehot_tok = (iota_v == ids).astype(jnp.float32)                  # [N,V]
        emb = jnp.dot(onehot_tok, wA_ref[RA_TOK:RA_TOK + V, :],
                      preferred_element_type=jnp.float32)                 # [N,H]
        iota_m = lax.broadcasted_iota(jnp.int32, (N, MVPAD), 1)
        onehot_meta = (iota_m == tts).astype(jnp.float32)                 # [N,MVPAD]

        # ---- MslmModel encoder: 2-layer tanh MLP; hidden never leaves VMEM ----
        h = jnp.tanh(jnp.dot(emb, wA_ref[RA_W1:RA_W1 + H, :],
                             preferred_element_type=jnp.float32)
                     + wA_ref[RA_B1:RA_B1 + 1, :])
        h = jnp.tanh(jnp.dot(h, wA_ref[RA_W2:RA_W2 + H, :],
                             preferred_element_type=jnp.float32)
                     + wA_ref[RA_B2:RA_B2 + 1, :])

        # ---- one lane-dense slab fills all outputs ----
        # cols [0,V) LM logits | [V,V+T) det logits | [COL_HID,128) hidden passthrough
        slab = (jnp.dot(h, wB_ref[RB_WH:RB_WH + H, :],
                        preferred_element_type=jnp.float32)
                + jnp.dot(onehot_meta, wB_ref[RB_META:RB_META + MVPAD, :],
                          preferred_element_type=jnp.float32)
                + wB_ref[RB_BIAS:RB_BIAS + 1, :])
        out_ref[0:N, :] = slab                                            # unmasked vst

        # ---- weighted softmax CE for both heads (int label cols + iota masks) ----
        # TODO(synk): no ignore_index handling — masking of padded tokens is assumed to
        # be carried by weight_matrix (zero weight), matching the original call pattern.
        col = lax.broadcasted_iota(jnp.int32, (N, LANES), 1)              # [N,128]

        def weighted_ce_num(mask, label_col):
            ml = jnp.where(mask, slab, jnp.float32(-1e30))
            m = jnp.max(ml, axis=-1, keepdims=True)                        # [N,1]
            # exp of the masked logits: out-of-mask lanes underflow to 0, never inf
            s = jnp.sum(jnp.exp(ml - m), axis=-1, keepdims=True)
            lse = jnp.log(s) + m
            lab = jnp.sum(jnp.where(col == label_col, slab, 0.0),
                          axis=-1, keepdims=True)
            return jnp.sum((lse - lab) * wts, axis=0, keepdims=True)       # [1,1]

        lm_num = weighted_ce_num(col < V, ids)
        det_num = weighted_ce_num((col >= V) & (col < V + T), det_col)

        if reduction == "mean":
            den = jnp.maximum(jnp.sum(wts, axis=0, keepdims=True), 1e-9)
            lm_loss = lm_num / den            # exact divide on a single scalar
            det_loss = det_num / den
        else:                                 # "sum"
            lm_loss, det_loss = lm_num, det_num

        # losses folded into the same output slab: row N, lanes 0/1
        lane = lax.broadcasted_iota(jnp.int32, (8, LANES), 1)
        sub = lax.broadcasted_iota(jnp.int32, (8, LANES), 0)
        out_ref[N:N + 8, :] = (jnp.where((sub == 0) & (lane == 0), lm_loss, 0.0)
                               + jnp.where((sub == 0) & (lane == 1), det_loss, 0.0))

    return kernel


# ------------------------------ parameter init / packing ------------------------------
def init_params(key):
    ks = jax.random.split(key, 10)
    s = 0.05
    return {
        "tok_emb":  jax.random.normal(ks[0], (V, H), jnp.float32) * s,
        "meta_emb": jax.random.normal(ks[1], (META_VOCAB, M), jnp.float32) * s,
        "w1": jax.random.normal(ks[2], (H, H), jnp.float32) * s,
        "b1": jnp.zeros((1, H), jnp.float32),
        "w2": jax.random.normal(ks[3], (H, H), jnp.float32) * s,
        "b2": jnp.zeros((1, H), jnp.float32),
        "w_lm": jax.random.normal(ks[4], (H, V), jnp.float32) * s,
        "b_lm": jnp.zeros((1, V), jnp.float32),
        "w_det_h": jax.random.normal(ks[5], (H, T), jnp.float32) * s,
        "w_det_m": jax.random.normal(ks[6], (M, T), jnp.float32) * s,
        "b_det": jnp.zeros((1, T), jnp.float32),
    }


def pack_params(params):
    """One-time packing of all weights into two lane/sublane-friendly slabs."""
    wA = jnp.zeros((RA_ROWS, H), jnp.float32)
    wA = wA.at[RA_TOK:RA_TOK + V].set(params["tok_emb"])
    wA = wA.at[RA_W1:RA_W1 + H].set(params["w1"])
    wA = wA.at[RA_W2:RA_W2 + H].set(params["w2"])
    wA = wA.at[RA_B1].set(params["b1"][0])
    wA = wA.at[RA_B2].set(params["b2"][0])

    wB = jnp.zeros((RB_ROWS, LANES), jnp.float32)
    wB = wB.at[RB_WH:RB_WH + H, 0:V].set(params["w_lm"])
    wB = wB.at[RB_WH:RB_WH + H, V:V + T].set(params["w_det_h"])
    wB = wB.at[RB_WH:RB_WH + H, COL_HID:].set(jnp.eye(H, dtype=jnp.float32))
    # Fold the meta embedding through the detection head once, at pack time.
    meta_head = params["meta_emb"] @ params["w_det_m"]          # [META_VOCAB, T]
    wB = wB.at[RB_META:RB_META + META_VOCAB, V:V + T].set(meta_head)
    wB = wB.at[RB_BIAS, 0:V].set(params["b_lm"][0])
    wB = wB.at[RB_BIAS, V:V + T].set(params["b_det"][0])
    return {"wA": wA, "wB": wB}


# ------------------------------ JointModel.forward ------------------------------
@functools.partial(jax.jit, static_argnames=("train",))
def joint_model_forward(packed, input_ids, token_type_ids, labels,
                        ms_weights, weight_matrix, train=True):
    """Mirrors JointModel.forward(input, labels, ms_weights, weight_matrix, train)."""
    # TODO(synk): DetectionModel dropout(drop_out) omitted — eval semantics (identity).
    input_size = input_ids.shape[0]
    ms_w = ms_weights[:input_size]                                       # [B]
    wts = (ms_w[:, None] * weight_matrix).astype(jnp.float32)            # [B,S]

    # Per-token metadata packed into a single [N,4] input (one DMA):
    # col0 input id (= LM label), col1 token_type id, col2 det label column, col3 weight.
    tok_meta = jnp.stack(
        [input_ids.reshape(-1).astype(jnp.float32),
         token_type_ids.reshape(-1).astype(jnp.float32),
         (labels.reshape(-1) + V).astype(jnp.float32),
         wts.reshape(-1)], axis=1)

    out = pl.pallas_call(                                 # no grid: single invocation,
        make_joint_kernel(REDUCTION),                     # whole arrays in VMEM, no
        out_shape=jax.ShapeDtypeStruct((N + 8, LANES),    # pipeline / double buffering
                                       jnp.float32),
    )(tok_meta, packed["wA"], packed["wB"])

    logits = out[:N, V:V + T].reshape(B, S, T)            # detection logits
    hidden_states = out[:N, COL_HID:].reshape(B, S, H)    # encoder hidden states
    loss = (out[N, 0] + out[N, 1]) if train else None
    return loss, logits, hidden_states


# ------------------------------ pure-JAX reference ------------------------------
def reference_forward(params, input_ids, token_type_ids, labels,
                      ms_weights, weight_matrix):
    ms_w = ms_weights[:input_ids.shape[0]]
    emb = params["tok_emb"][input_ids.reshape(-1)]
    h = jnp.tanh(emb @ params["w1"] + params["b1"])
    h = jnp.tanh(h @ params["w2"] + params["b2"])
    meta = params["meta_emb"][token_type_ids.reshape(-1)]
    lm_logits = h @ params["w_lm"] + params["b_lm"]
    det_logits = h @ params["w_det_h"] + meta @ params["w_det_m"] + params["b_det"]
    wts = (ms_w[:, None] * weight_matrix).reshape(-1)

    def wce(logits, lab):
        lse = jax.scipy.special.logsumexp(logits, axis=-1)
        ce = lse - jnp.take_along_axis(logits, lab.reshape(-1, 1), axis=-1)[:, 0]
        num = jnp.sum(ce * wts)
        if REDUCTION == "mean":
            return num / jnp.maximum(jnp.sum(wts), 1e-9)
        return num

    loss = wce(lm_logits, input_ids.reshape(-1)) + wce(det_logits, labels.reshape(-1))
    return loss, det_logits.reshape(B, S, T), h.reshape(B, S, H)


if __name__ == "__main__":
    key = jax.random.PRNGKey(0)
    k_param, k_ids, k_tt, k_lab, k_msw, k_wm = jax.random.split(key, 6)

    params = init_params(k_param)
    packed = pack_params(params)                     # one-time packing, outside forward

    input_ids = jax.random.randint(k_ids, (B, S), 0, V, dtype=jnp.int32)
    token_type_ids = jax.random.randint(k_tt, (B, S), 0, META_VOCAB, dtype=jnp.int32)
    labels = jax.random.randint(k_lab, (B, S), 0, T, dtype=jnp.int32)
    # ms_weights is allocated for a larger batch and sliced to input_size inside forward
    ms_weights = jax.random.uniform(k_msw, (4,), jnp.float32, 0.5, 1.5)
    weight_matrix = jax.random.uniform(k_wm, (B, S), jnp.float32, 0.5, 1.5)

    loss, logits, hidden_states = joint_model_forward(
        packed, input_ids, token_type_ids, labels, ms_weights, weight_matrix,
        train=True)
    jax.block_until_ready((loss, logits, hidden_states))

    assert logits.shape == (B, S, T)
    assert hidden_states.shape == (B, S, H)
    assert loss.shape == ()
    assert bool(jnp.isfinite(loss))

    # Loose-tolerance check vs pure-JAX reference (MXU precision).
    ref_loss, ref_logits, ref_hidden = reference_forward(
        params, input_ids, token_type_ids, labels, ms_weights, weight_matrix)
    assert jnp.allclose(logits, ref_logits, rtol=5e-2, atol=1e-3)
    assert jnp.allclose(hidden_states, ref_hidden, rtol=5e-2, atol=1e-3)
    assert jnp.allclose(loss, ref_loss, rtol=5e-2, atol=1e-3)

    print("KERNEL_OK")
</pallas_src>

<mosaic_0001>
module attributes {stable_mosaic.version = 11 : i64} {
  func.func @kernel(%arg0: memref<16x4xf32, #tpu.memory_space<vmem>>, %arg1: memref<136x32xf32, #tpu.memory_space<vmem>>, %arg2: memref<48x128xf32, #tpu.memory_space<vmem>>, %arg3: memref<24x128xf32, #tpu.memory_space<vmem>>) attributes {dimension_semantics = [], scalar_prefetch = 0 : i64, scratch_operands = 0 : i64, tpu.core_type = #tpu.core_type<tc>} {
    %c0 = arith.constant 0 : index
    %c0_0 = arith.constant 0 : index
    %0 = vector.load %arg0[%c0, %c0_0] : memref<16x4xf32, #tpu.memory_space<vmem>>, vector<16x4xf32>
    %1 = vector.extract_strided_slice %0 {offsets = [0, 0], sizes = [16, 1], strides = [1, 1]} : vector<16x4xf32> to vector<16x1xf32>
    %2 = arith.fptosi %1 : vector<16x1xf32> to vector<16x1xi32>
    %3 = vector.extract_strided_slice %0 {offsets = [0, 1], sizes = [16, 1], strides = [1, 1]} : vector<16x4xf32> to vector<16x1xf32>
    %4 = arith.fptosi %3 : vector<16x1xf32> to vector<16x1xi32>
    %5 = vector.extract_strided_slice %0 {offsets = [0, 2], sizes = [16, 1], strides = [1, 1]} : vector<16x4xf32> to vector<16x1xf32>
    %6 = arith.fptosi %5 : vector<16x1xf32> to vector<16x1xi32>
    %7 = vector.extract_strided_slice %0 {offsets = [0, 3], sizes = [16, 1], strides = [1, 1]} : vector<16x4xf32> to vector<16x1xf32>
    %8 = tpu.iota {dimensions = array<i32: 1>} : vector<16x64xi32>
    %9 = vector.broadcast %2 : vector<16x1xi32> to vector<16x64xi32>
    %10 = arith.cmpi eq, %8, %9 : vector<16x64xi32>
    %11 = arith.extui %10 : vector<16x64xi1> to vector<16x64xi32>
    %12 = arith.sitofp %11 : vector<16x64xi32> to vector<16x64xf32>
    %c0_1 = arith.constant 0 : index
    %c0_2 = arith.constant 0 : index
    %13 = vector.load %arg1[%c0_1, %c0_2] : memref<136x32xf32, #tpu.memory_space<vmem>>, vector<64x32xf32>
    %cst = arith.constant dense<0.000000e+00> : vector<16x32xf32>
    %14 = tpu.matmul %12, %13, %cst {dimension_numbers = #tpu.dot_dimension_numbers<[1], [0], [0], [1], [0, 0, 1, 1], [], []>} : vector<16x64xf32>, vector<64x32xf32>, vector<16x32xf32> -> vector<16x32xf32>
    %15 = tpu.iota {dimensions = array<i32: 1>} : vector<16x8xi32>
    %16 = vector.broadcast %4 : vector<16x1xi32> to vector<16x8xi32>
    %17 = arith.cmpi eq, %15, %16 : vector<16x8xi32>
    %18 = arith.extui %17 : vector<16x8xi1> to vector<16x8xi32>
    %19 = arith.sitofp %18 : vector<16x8xi32> to vector<16x8xf32>
    %c64 = arith.constant 64 : index
    %c0_3 = arith.constant 0 : index
    %20 = vector.load %arg1[%c64, %c0_3] : memref<136x32xf32, #tpu.memory_space<vmem>>, vector<32x32xf32>
    %cst_4 = arith.constant dense<0.000000e+00> : vector<16x32xf32>
    %21 = tpu.matmul %14, %20, %cst_4 {dimension_numbers = #tpu.dot_dimension_numbers<[1], [0], [0], [1], [0, 0, 1, 1], [], []>} : vector<16x32xf32>, vector<32x32xf32>, vector<16x32xf32> -> vector<16x32xf32>
    %c128 = arith.constant 128 : index
    %c0_5 = arith.constant 0 : index
    %22 = vector.load %arg1[%c128, %c0_5] : memref<136x32xf32, #tpu.memory_space<vmem>>, vector<1x32xf32>
    %23 = vector.broadcast %22 : vector<1x32xf32> to vector<16x32xf32>
    %24 = arith.addf %21, %23 : vector<16x32xf32>
    %25 = math.tanh %24 : vector<16x32xf32>
    %c96 = arith.constant 96 : index
    %c0_6 = arith.constant 0 : index
    %26 = vector.load %arg1[%c96, %c0_6] : memref<136x32xf32, #tpu.memory_space<vmem>>, vector<32x32xf32>
    %cst_7 = arith.constant dense<0.000000e+00> : vector<16x32xf32>
    %27 = tpu.matmul %25, %26, %cst_7 {dimension_numbers = #tpu.dot_dimension_numbers<[1], [0], [0], [1], [0, 0, 1, 1], [], []>} : vector<16x32xf32>, vector<32x32xf32>, vector<16x32xf32> -> vector<16x32xf32>
    %c129 = arith.constant 129 : index
    %c0_8 = arith.constant 0 : index
    %28 = vector.load %arg1[%c129, %c0_8] : memref<136x32xf32, #tpu.memory_space<vmem>>, vector<1x32xf32>
    %29 = vector.broadcast %28 : vector<1x32xf32> to vector<16x32xf32>
    %30 = arith.addf %27, %29 : vector<16x32xf32>
    %31 = math.tanh %30 : vector<16x32xf32>
    %c0_9 = arith.constant 0 : index
    %c0_10 = arith.constant 0 : index
    %32 = vector.load %arg2[%c0_9, %c0_10] : memref<48x128xf32, #tpu.memory_space<vmem>>, vector<32x128xf32>
    %cst_11 = arith.constant dense<0.000000e+00> : vector<16x128xf32>
    %33 = tpu.matmul %31, %32, %cst_11 {dimension_numbers = #tpu.dot_dimension_numbers<[1], [0], [0], [1], [0, 0, 1, 1], [], []>} : vector<16x32xf32>, vector<32x128xf32>, vector<16x128xf32> -> vector<16x128xf32>
    %c32 = arith.constant 32 : index
    %c0_12 = arith.constant 0 : index
    %34 = vector.load %arg2[%c32, %c0_12] : memref<48x128xf32, #tpu.memory_space<vmem>>, vector<8x128xf32>
    %cst_13 = arith.constant dense<0.000000e+00> : vector<16x128xf32>
    %35 = tpu.matmul %19, %34, %cst_13 {dimension_numbers = #tpu.dot_dimension_numbers<[1], [0], [0], [1], [0, 0, 1, 1], [], []>} : vector<16x8xf32>, vector<8x128xf32>, vector<16x128xf32> -> vector<16x128xf32>
    %36 = arith.addf %33, %35 : vector<16x128xf32>
    %c40 = arith.constant 40 : index
    %c0_14 = arith.constant 0 : index
    %37 = vector.load %arg2[%c40, %c0_14] : memref<48x128xf32, #tpu.memory_space<vmem>>, vector<1x128xf32>
    %38 = vector.broadcast %37 : vector<1x128xf32> to vector<16x128xf32>
    %39 = arith.addf %36, %38 : vector<16x128xf32>
    %c0_15 = arith.constant 0 : index
    %c0_16 = arith.constant 0 : index
    %40 = vector.load %arg3[%c0_15, %c0_16] : memref<24x128xf32, #tpu.memory_space<vmem>>, vector<16x128xf32>
    tpu.vector_store %arg3[%c0_15, %c0_16], %39 {strides = array<i32>} : memref<24x128xf32, #tpu.memory_space<vmem>>, vector<16x128xf32>,
    %41 = tpu.iota {dimensions = array<i32: 1>} : vector<16x128xi32>
    %c64_i32 = arith.constant 64 : i32
    %42 = vector.broadcast %c64_i32 : i32 to vector<16x128xi32>
    %43 = arith.cmpi slt, %41, %42 : vector<16x128xi32>
    %cst_17 = arith.constant -1.000000e+30 : f32
    %44 = vector.broadcast %cst_17 : f32 to vector<16x128xf32>
    %45 = arith.select %43, %39, %44 : vector<16x128xi1>, vector<16x128xf32>
    %cst_18 = arith.constant dense<0xFF800000> : vector<16xf32>
    %46 = vector.multi_reduction <maximumf>, %45, %cst_18 [1] : vector<16x128xf32> to vector<16xf32>
    %47 = vector.shape_cast %46 : vector<16xf32> to vector<16x1xf32>
    %48 = vector.broadcast %47 : vector<16x1xf32> to vector<16x128xf32>
    %49 = arith.subf %45, %48 : vector<16x128xf32>
    %50 = math.exp %49 : vector<16x128xf32>
    %cst_19 = arith.constant dense<0.000000e+00> : vector<16xf32>
    %51 = vector.multi_reduction <add>, %50, %cst_19 [1] : vector<16x128xf32> to vector<16xf32>
    %52 = vector.shape_cast %51 : vector<16xf32> to vector<16x1xf32>
    %53 = math.log %52 : vector<16x1xf32>
    %54 = arith.addf %53, %47 : vector<16x1xf32>
    %55 = vector.broadcast %2 : vector<16x1xi32> to vector<16x128xi32>
    %56 = arith.cmpi eq, %41, %55 : vector<16x128xi32>
    %cst_20 = arith.constant 0.000000e+00 : f32
    %57 = vector.broadcast %cst_20 : f32 to vector<16x128xf32>
    %58 = arith.select %56, %39, %57 : vector<16x128xi1>, vector<16x128xf32>
    %cst_21 = arith.constant dense<0.000000e+00> : vector<16xf32>
    %59 = vector.multi_reduction <add>, %58, %cst_21 [1] : vector<16x128xf32> to vector<16xf32>
    %60 = vector.shape_cast %59 : vector<16xf32> to vector<16x1xf32>
    %61 = arith.subf %54, %60 : vector<16x1xf32>
    %62 = arith.mulf %61, %7 : vector<16x1xf32>
    %cst_22 = arith.constant dense<0.000000e+00> : vector<1xf32>
    %63 = vector.multi_reduction <add>, %62, %cst_22 [0] : vector<16x1xf32> to vector<1xf32>
    %64 = vector.shape_cast %63 : vector<1xf32> to vector<1x1xf32>
    %c64_i32_23 = arith.constant 64 : i32
    %65 = vector.broadcast %c64_i32_23 : i32 to vector<16x128xi32>
    %66 = arith.cmpi sge, %41, %65 : vector<16x128xi32>
    %c69_i32 = arith.constant 69 : i32
    %67 = vector.broadcast %c69_i32 : i32 to vector<16x128xi32>
    %68 = arith.cmpi slt, %41, %67 : vector<16x128xi32>
    %69 = arith.andi %66, %68 : vector<16x128xi1>
    %cst_24 = arith.constant -1.000000e+30 : f32
    %70 = vector.broadcast %cst_24 : f32 to vector<16x128xf32>
    %71 = arith.select %69, %39, %70 : vector<16x128xi1>, vector<16x128xf32>
    %cst_25 = arith.constant dense<0xFF800000> : vector<16xf32>
    %72 = vector.multi_reduction <maximumf>, %71, %cst_25 [1] : vector<16x128xf32> to vector<16xf32>
    %73 = vector.shape_cast %72 : vector<16xf32> to vector<16x1xf32>
    %74 = vector.broadcast %73 : vector<16x1xf32> to vector<16x128xf32>
    %75 = arith.subf %71, %74 : vector<16x128xf32>
    %76 = math.exp %75 : vector<16x128xf32>
    %cst_26 = arith.constant dense<0.000000e+00> : vector<16xf32>
    %77 = vector.multi_reduction <add>, %76, %cst_26 [1] : vector<16x128xf32> to vector<16xf32>
    %78 = vector.shape_cast %77 : vector<16xf32> to vector<16x1xf32>
    %79 = math.log %78 : vector<16x1xf32>
    %80 = arith.addf %79, %73 : vector<16x1xf32>
    %81 = vector.broadcast %6 : vector<16x1xi32> to vector<16x128xi32>
    %82 = arith.cmpi eq, %41, %81 : vector<16x128xi32>
    %cst_27 = arith.constant 0.000000e+00 : f32
    %83 = vector.broadcast %cst_27 : f32 to vector<16x128xf32>
    %84 = arith.select %82, %39, %83 : vector<16x128xi1>, vector<16x128xf32>
    %cst_28 = arith.constant dense<0.000000e+00> : vector<16xf32>
    %85 = vector.multi_reduction <add>, %84, %cst_28 [1] : vector<16x128xf32> to vector<16xf32>
    %86 = vector.shape_cast %85 : vector<16xf32> to vector<16x1xf32>
    %87 = arith.subf %80, %86 : vector<16x1xf32>
    %88 = arith.mulf %87, %7 : vector<16x1xf32>
    %cst_29 = arith.constant dense<0.000000e+00> : vector<1xf32>
    %89 = vector.multi_reduction <add>, %88, %cst_29 [0] : vector<16x1xf32> to vector<1xf32>
    %90 = vector.shape_cast %89 : vector<1xf32> to vector<1x1xf32>
    %cst_30 = arith.constant dense<0.000000e+00> : vector<1xf32>
    %91 = vector.multi_reduction <add>, %7, %cst_30 [0] : vector<16x1xf32> to vector<1xf32>
    %92 = vector.shape_cast %91 : vector<1xf32> to vector<1x1xf32>
    %cst_31 = arith.constant 9.99999971E-10 : f32
    %93 = vector.broadcast %cst_31 : f32 to vector<1x1xf32>
    %94 = arith.maximumf %92, %93 : vector<1x1xf32>
    %95 = arith.divf %64, %94 : vector<1x1xf32>
    %96 = arith.divf %90, %94 : vector<1x1xf32>
    %97 = tpu.iota {dimensions = array<i32: 1>} : vector<8x128xi32>
    %98 = tpu.iota {dimensions = array<i32: 0>} : vector<8x128xi32>
    %c0_i32 = arith.constant 0 : i32
    %99 = vector.broadcast %c0_i32 : i32 to vector<8x128xi32>
    %100 = arith.cmpi eq, %98, %99 : vector<8x128xi32>
    %c0_i32_32 = arith.constant 0 : i32
    %101 = vector.broadcast %c0_i32_32 : i32 to vector<8x128xi32>
    %102 = arith.cmpi eq, %97, %101 : vector<8x128xi32>
    %103 = arith.andi %100, %102 : vector<8x128xi1>
    %cst_33 = arith.constant 0.000000e+00 : f32
    %104 = vector.shape_cast %95 : vector<1x1xf32> to vector<1x1xf32>
    %105 = vector.broadcast %104 : vector<1x1xf32> to vector<8x128xf32>
    %106 = vector.broadcast %cst_33 : f32 to vector<8x128xf32>
    %107 = arith.select %103, %105, %106 : vector<8x128xi1>, vector<8x128xf32>
    %c0_i32_34 = arith.constant 0 : i32
    %108 = vector.broadcast %c0_i32_34 : i32 to vector<8x128xi32>
    %109 = arith.cmpi eq, %98, %108 : vector<8x128xi32>
    %c1_i32 = arith.constant 1 : i32
    %110 = vector.broadcast %c1_i32 : i32 to vector<8x128xi32>
    %111 = arith.cmpi eq, %97, %110 : vector<8x128xi32>
    %112 = arith.andi %109, %111 : vector<8x128xi1>
    %cst_35 = arith.constant 0.000000e+00 : f32
    %113 = vector.shape_cast %96 : vector<1x1xf32> to vector<1x1xf32>
    %114 = vector.broadcast %113 : vector<1x1xf32> to vector<8x128xf32>
    %115 = vector.broadcast %cst_35 : f32 to vector<8x128xf32>
    %116 = arith.select %112, %114, %115 : vector<8x128xi1>, vector<8x128xf32>
    %117 = arith.addf %107, %116 : vector<8x128xf32>
    %c16 = arith.constant 16 : index
    %c0_36 = arith.constant 0 : index
    %118 = vector.load %arg3[%c16, %c0_36] : memref<24x128xf32, #tpu.memory_space<vmem>>, vector<8x128xf32>
    tpu.vector_store %arg3[%c16, %c0_36], %117 {strides = array<i32>} : memref<24x128xf32, #tpu.memory_space<vmem>>, vector<8x128xf32>,
    return
  }
}

</mosaic_0001>

<llo_original>
// kernel: joint_model_forward.1
$region0: #{joint_model_forward.1}
  #allocation0 [shape = 'u32[]', space=smem, size = 0x4, offset = 0x4, fixed_abs, tag = 'smem constant byte address 0x4 - core index']
  #allocation1 [shape = 'u32[72,128]{1,0:T(1,128)}', space=vmem, size = 0x9000, scoped, tag = 'internal scratch']
  %s0 = inlined_call_operand.vmem [shape: f32[16,4], index: 0, kind: input, shape index: {}]
  %s1 = inlined_call_operand.vmem [shape: f32[136,32], index: 1, kind: input, shape index: {}]
  %s2 = inlined_call_operand.vmem [shape: f32[48,128], index: 2, kind: input, shape index: {}]
  %s3 = inlined_call_operand.vmem [shape: f32[24,128], index: 3, kind: output, shape index: {}]
  %s4 = sld [smem:[#allocation0]]
  $region22: #{joint_model_forward.1} parent=0
    _
  %s6 = ssub.s32 1, %s4
  %s7 = scalar_select 0, %s6, %s4
  // Predicated region
  $region2: #{joint_model_forward.1} parent=0 // pred_check
    _
  $region3: #{joint_model_forward.1} parent=0 // pred_check_branch
    %9 = sbr.rel (0) target = $region5
  $region4: #{joint_model_forward.1} parent=0 // pred_region
    _
  $region5: #{joint_model_forward.1} parent=0 // pred_fallthru
    _
  // Predicated region
  $region6: #{joint_model_forward.1} parent=0 // pred_check
    _
  $region7: #{joint_model_forward.1} parent=0 // pred_check_branch
    %11 = sbr.rel (0) target = $region9
  $region8: #{joint_model_forward.1} parent=0 // pred_region
    _
  $region9: #{joint_model_forward.1} parent=0 // pred_fallthru
    _
  // Predicated region
  $region10: #{joint_model_forward.1} parent=0 // pred_check
    _
  $region11: #{joint_model_forward.1} parent=0 // pred_check_branch
    %13 = sbr.rel (0) target = $region13
  $region12: #{joint_model_forward.1} parent=0 // pred_region
    _
  $region13: #{joint_model_forward.1} parent=0 // pred_fallthru
    _
  %v14 = vld [vmem:[%s0] sm:$0xff]
  %v15 = vld [vmem:[%s0 + $0x8] sm:$0xff]
  %v16 = vcvt.f32.s32.to.zero.pseudo %v14
  %v17 = vcvt.f32.s32.to.zero.pseudo %v15
  %v18 = vlaneseq
  %v19 = vand.u32 %v18, 127
  %20 = vset.pattern.permute.xlu0 0
  %21 = vperm.xlu0 %20, %v16
  %v22 = vpop.permute.xlu0 %21
  %23 = vset.pattern.permute.xlu0 0
  %24 = vperm.xlu0 %23, %v17
  %v25 = vpop.permute.xlu0 %24
  %vm26 = vcmp.eq.s32.totalorder %v19, %v22
  %vm27 = vcmp.eq.s32.totalorder %v19, %v25
  %v28 = vsel %vm26, 1, 0
  %v29 = vsel %vm27, 1, 0
  %v30 = vcvt.s32.f32 %v28
  %v31 = vcvt.s32.f32 %v29
  %v32 = vld [vmem:[%s1] sm:$0xff]
  %v33 = vld [vmem:[%s1 + $0x8] sm:$0xff]
  %v34 = vld [vmem:[%s1 + $0x10] sm:$0xff]
  %v35 = vld [vmem:[%s1 + $0x18] sm:$0xff]
  %v36 = vld [vmem:[%s1 + $0x20] sm:$0xff]
  %v37 = vld [vmem:[%s1 + $0x28] sm:$0xff]
  %v38 = vld [vmem:[%s1 + $0x30] sm:$0xff]
  %v39 = vld [vmem:[%s1 + $0x38] sm:$0xff]
  %vm40 = vcmask 523264
  %v42 = vsel %vm40, %v30, 0
  %v45 = vsel %vm40, %v31, 0
  %47 = vmatpush.msra.mxu0 0.0
  %48 = vmatpush.msra.mxu0 0.0
  %49 = vmatpush.msra.mxu0 0.0
  %50 = vmatpush.msra.mxu0 0.0
  %51 = vmatpush.msra.mxu0 0.0
  %52 = vmatpush.msra.mxu0 0.0
  %53 = vmatpush.msra.mxu0 0.0
  %54 = vmatpush.msra.mxu0 0.0
  %55 = vmatpush.msra.mxu0 %v39
  %56 = vmatpush.msra.mxu0 %v38
  %57 = vmatpush.msra.mxu0 %v37
  %58 = vmatpush.msra.mxu0 %v36
  %59 = vmatpush.msra.mxu0 %v35
  %60 = vmatpush.msra.mxu0 %v34
  %61 = vmatpush.msra.mxu0 %v33
  %62 = vmatpush.msra.mxu0 %v32
  %63 = vmatmul.f32.gmra.mxu0 %v42
  %v64 = vpop.f32.mrf.mxu0
  %v65 = vadd.f32 0.0, %v64
  %66 = vmatmul.f32.gmra.mxu0 %v45
  %v67 = vpop.f32.mrf.mxu0
  %v68 = vadd.f32 0.0, %v67
  %69 = vdwg.mxu0
  %70 = vset.pattern.permute.xlu0 1
  %71 = vperm.xlu0 %70, %v16
  %v72 = vpop.permute.xlu0 %71
  %73 = vset.pattern.permute.xlu0 1
  %74 = vperm.xlu0 %73, %v17
  %v75 = vpop.permute.xlu0 %74
  %vm76 = vcmp.eq.s32.totalorder %v19, %v72
  %vm77 = vcmp.eq.s32.totalorder %v19, %v75
  %v78 = vsel %vm76, 1, 0
  %v79 = vsel %vm77, 1, 0
  %v80 = vcvt.s32.f32 %v78
  %v81 = vcvt.s32.f32 %v79
  %v82 = vld [vmem:[%s1 + $0x40] sm:$0xff]
  %v83 = vld [vmem:[%s1 + $0x48] sm:$0xff]
  %v84 = vld [vmem:[%s1 + $0x50] sm:$0xff]
  %v85 = vld [vmem:[%s1 + $0x58] sm:$0xff]
  %v86 = vld [vmem:[%s1 + $0x80] sm:$0x1]
  %v87 = vperm.slane %v86, 0
  %vm88 = vcmask 261120
  %v90 = vsel %vm88, %v65, 0
  %v93 = vsel %vm88, %v68, 0
  %95 = vmatpush.msra.mxu0 0.0
  %96 = vmatpush.msra.mxu0 0.0
  %97 = vmatpush.msra.mxu0 0.0
  %98 = vmatpush.msra.mxu0 0.0
  %99 = vmatpush.msra.mxu0 0.0
  %100 = vmatpush.msra.mxu0 0.0
  %101 = vmatpush.msra.mxu0 0.0
  %102 = vmatpush.msra.mxu0 0.0
  %103 = vmatpush.msra.mxu0 0.0
  %104 = vmatpush.msra.mxu0 0.0
  %105 = vmatpush.msra.mxu0 0.0
  %106 = vmatpush.msra.mxu0 0.0
  %107 = vmatpush.msra.mxu0 %v85
  %108 = vmatpush.msra.mxu0 %v84
  %109 = vmatpush.msra.mxu0 %v83
  %110 = vmatpush.msra.mxu0 %v82
  %111 = vmatmul.f32.gmra.mxu0 %v90
  %v112 = vpop.f32.mrf.mxu0
  %v113 = vadd.f32 %v87, %v112
  %114 = vmatmul.f32.gmra.mxu0 %v93
  %v115 = vpop.f32.mrf.mxu0
  %v116 = vadd.f32 %v87, %v115
  %117 = vdwg.mxu0
  %v118 = vtanh.pop %v113
  %v119 = vtanh.pop %v116
  %v120 = vld [vmem:[%s1 + $0x60] sm:$0xff]
  %v121 = vld [vmem:[%s1 + $0x68] sm:$0xff]
  %v122 = vld [vmem:[%s1 + $0x70] sm:$0xff]
  %v123 = vld [vmem:[%s1 + $0x78] sm:$0xff]
  %v124 = vld [vmem:[%s1 + $0x81] sm:$0x1]
  %v125 = vperm.slane %v124, 0
  %v127 = vsel %vm88, %v118, 0
  %v130 = vsel %vm88, %v119, 0
  %132 = vmatpush.msra.mxu0 0.0
  %133 = vmatpush.msra.mxu0 0.0
  %134 = vmatpush.msra.mxu0 0.0
  %135 = vmatpush.msra.mxu0 0.0
  %136 = vmatpush.msra.mxu0 0.0
  %137 = vmatpush.msra.mxu0 0.0
  %138 = vmatpush.msra.mxu0 0.0
  %139 = vmatpush.msra.mxu0 0.0
  %140 = vmatpush.msra.mxu0 0.0
  %141 = vmatpush.msra.mxu0 0.0
  %142 = vmatpush.msra.mxu0 0.0
  %143 = vmatpush.msra.mxu0 0.0
  %144 = vmatpush.msra.mxu0 %v123
  %145 = vmatpush.msra.mxu0 %v122
  %146 = vmatpush.msra.mxu0 %v121
  %147 = vmatpush.msra.mxu0 %v120
  %148 = vmatmul.f32.gmra.mxu0 %v127
  %v149 = vpop.f32.mrf.mxu0
  %v150 = vadd.f32 %v125, %v149
  %151 = vmatmul.f32.gmra.mxu0 %v130
  %v152 = vpop.f32.mrf.mxu0
  %v153 = vadd.f32 %v125, %v152
  %154 = vdwg.mxu0
  %v155 = vtanh.pop %v150
  %v156 = vtanh.pop %v153
  %v157 = vld [vmem:[%s2] sm:$0xff]
  %v158 = vld [vmem:[%s2 + $0x8] sm:$0xff]
  %v159 = vld [vmem:[%s2 + $0x10] sm:$0xff]
  %v160 = vld [vmem:[%s2 + $0x18] sm:$0xff]
  %v161 = vld [vmem:[%s2 + $0x20] sm:$0xff]
  %vm162 = vcmask 64512
  %v164 = vsel %vm162, %v80, 0
  %v167 = vsel %vm162, %v81, 0
  %169 = vmatpush.msra.mxu0 0.0
  %170 = vmatpush.msra.mxu0 0.0
  %171 = vmatpush.msra.mxu0 0.0
  %172 = vmatpush.msra.mxu0 0.0
  %173 = vmatpush.msra.mxu0 0.0
  %174 = vmatpush.msra.mxu0 0.0
  %175 = vmatpush.msra.mxu0 0.0
  %176 = vmatpush.msra.mxu0 0.0
  %177 = vmatpush.msra.mxu0 0.0
  %178 = vmatpush.msra.mxu0 0.0
  %179 = vmatpush.msra.mxu0 0.0
  %180 = vmatpush.msra.mxu0 0.0
  %181 = vmatpush.msra.mxu0 0.0
  %182 = vmatpush.msra.mxu0 0.0
  %183 = vmatpush.msra.mxu0 0.0
  %184 = vmatpush.msra.mxu0 %v161
  %185 = vmatmul.f32.gmra.mxu0 %v164
  %v186 = vpop.f32.mrf.mxu0
  %v187 = vadd.f32 0.0, %v186
  %188 = vmatmul.f32.gmra.mxu0 %v167
  %v189 = vpop.f32.mrf.mxu0
  %v190 = vadd.f32 0.0, %v189
  %191 = vdwg.mxu0
  %v193 = vsel %vm88, %v155, 0
  %v196 = vsel %vm88, %v156, 0
  %198 = vmatpush.msra.mxu0 0.0
  %199 = vmatpush.msra.mxu0 0.0
  %200 = vmatpush.msra.mxu0 0.0
  %201 = vmatpush.msra.mxu0 0.0
  %202 = vmatpush.msra.mxu0 0.0
  %203 = vmatpush.msra.mxu0 0.0
  %204 = vmatpush.msra.mxu0 0.0
  %205 = vmatpush.msra.mxu0 0.0
  %206 = vmatpush.msra.mxu0 0.0
  %207 = vmatpush.msra.mxu0 0.0
  %208 = vmatpush.msra.mxu0 0.0
  %209 = vmatpush.msra.mxu0 0.0
  %210 = vmatpush.msra.mxu0 %v160
  %211 = vmatpush.msra.mxu0 %v159
  %212 = vmatpush.msra.mxu0 %v158
  %213 = vmatpush.msra.mxu0 %v157
  %214 = vmatmul.f32.gmra.mxu0 %v193
  %v215 = vpop.f32.mrf.mxu0
  %v216 = vadd.f32 %v187, %v215
  %217 = vmatmul.f32.gmra.mxu0 %v196
  %v218 = vpop.f32.mrf.mxu0
  %v219 = vadd.f32 %v190, %v218
  %220 = vdwg.mxu0
  %v221 = vld [vmem:[%s2 + $0x28] sm:$0x1]
  %v222 = vperm.slane %v221, 0
  %v223 = vadd.f32 %v216, %v222
  %v224 = vadd.f32 %v219, %v222
  %225 = vst [vmem:[%s3] sm:$0xff] %v223
  %226 = vst [vmem:[%s3 + $0x8] sm:$0xff] %v224
  %vm227 = vcmp.lt.s32.totalorder %v19, 64
  %v228 = vsel %vm227, %v223, -1e+30
  %v229 = vsel %vm227, %v224, -1e+30
  %230 = vmax.xlane.f32.xlu0 %v228
  %v231 = vpop.xlane.xlu0 %230
  %232 = vmax.xlane.f32.xlu0 %v229
  %v233 = vpop.xlane.xlu0 %232
  %v234 = vsub.f32 %v228, %v231
  %v235 = vsub.f32 %v229, %v233
  %v236 = vmul.f32 %v234, 1.442695
  %v237 = vpow.pop %v236
  %v238 = vmul.f32 %v235, 1.442695
  %v239 = vpow.pop %v238
  %240 = vadd.xlane.f32.xlu0 %v237
  %v241 = vpop.xlane.xlu0 %240
  %242 = vadd.xlane.f32.xlu0 %v239
  %v243 = vpop.xlane.xlu0 %242
  %v244 = vlog2.pop %v241
  %v245 = vmul.f32 %v244, 0.6931472
  %v246 = vlog2.pop %v243
  %v247 = vmul.f32 %v246, 0.6931472
  %v248 = vadd.f32 %v245, %v231
  %v249 = vadd.f32 %v247, %v233
  %v250 = vsel %vm26, %v223, 0.0
  %v251 = vsel %vm27, %v224, 0.0
  %252 = vadd.xlane.f32.xlu0 %v250
  %v253 = vpop.xlane.xlu0 %252
  %254 = vadd.xlane.f32.xlu0 %v251
  %v255 = vpop.xlane.xlu0 %254
  %v256 = vsub.f32 %v248, %v253
  %v257 = vsub.f32 %v249, %v255
  %v258 = vmul.f32 %v256, %v14
  %v259 = vmul.f32 %v257, %v15
  %vm260 = vcmask 31768
  %v261 = vsel %vm260, %v258, 0.0
  %v262 = vsel %vm260, %v259, 0.0
  %v263 = vadd.f32 %v261, %v262
  %v264 = vrot.slane %v263, 4
  %v265 = vadd.f32 %v263, %v264
  %v266 = vrot.slane %v265, 2
  %v267 = vadd.f32 %v265, %v266
  %v268 = vrot.slane %v267, 1
  %v269 = vadd.f32 %v267, %v268
  %vm270 = vcmp.ge.s32.totalorder %v19, 64
  %vm271 = vcmp.lt.s32.totalorder %v19, 69
  %vm272 = vmand %vm270, %vm271
  %v273 = vsel %vm272, %v223, -1e+30
  %v274 = vsel %vm272, %v224, -1e+30
  %275 = vmax.xlane.f32.xlu0 %v273
  %v276 = vpop.xlane.xlu0 %275
  %277 = vmax.xlane.f32.xlu0 %v274
  %v278 = vpop.xlane.xlu0 %277
  %v279 = vsub.f32 %v273, %v276
  %v280 = vsub.f32 %v274, %v278
  %v281 = vmul.f32 %v279, 1.442695
  %v282 = vpow.pop %v281
  %v283 = vmul.f32 %v280, 1.442695
  %v284 = vpow.pop %v283
  %285 = vadd.xlane.f32.xlu0 %v282
  %v286 = vpop.xlane.xlu0 %285
  %287 = vadd.xlane.f32.xlu0 %v284
  %v288 = vpop.xlane.xlu0 %287
  %v289 = vlog2.pop %v286
  %v290 = vmul.f32 %v289, 0.6931472
  %v291 = vlog2.pop %v288
  %v292 = vmul.f32 %v291, 0.6931472
  %v293 = vadd.f32 %v290, %v276
  %v294 = vadd.f32 %v292, %v278
  %295 = vset.pattern.permute.xlu0 2
  %296 = vperm.xlu0 %295, %v16
  %v297 = vpop.permute.xlu0 %296
  %298 = vset.pattern.permute.xlu0 2
  %299 = vperm.xlu0 %298, %v17
  %v300 = vpop.permute.xlu0 %299
  %vm301 = vcmp.eq.s32.totalorder %v19, %v297
  %vm302 = vcmp.eq.s32.totalorder %v19, %v300
  %v303 = vsel %vm301, %v223, 0.0
  %v304 = vsel %vm302, %v224, 0.0
  %305 = vadd.xlane.f32.xlu0 %v303
  %v306 = vpop.xlane.xlu0 %305
  %307 = vadd.xlane.f32.xlu0 %v304
  %v308 = vpop.xlane.xlu0 %307
  %v309 = vsub.f32 %v293, %v306
  %v310 = vsub.f32 %v294, %v308
  %v311 = vmul.f32 %v309, %v14
  %v312 = vmul.f32 %v310, %v15
  %v313 = vsel %vm260, %v311, 0.0
  %v314 = vsel %vm260, %v312, 0.0
  %v315 = vadd.f32 %v313, %v314
  %v316 = vrot.slane %v315, 4
  %v317 = vadd.f32 %v315, %v316
  %v318 = vrot.slane %v317, 2
  %v319 = vadd.f32 %v317, %v318
  %v320 = vrot.slane %v319, 1
  %v321 = vadd.f32 %v319, %v320
  %v322 = vsel %vm260, %v14, 0.0
  %v323 = vsel %vm260, %v15, 0.0
  %v324 = vadd.f32 %v322, %v323
  %v325 = vrot.slane %v324, 4
  %v326 = vadd.f32 %v324, %v325
  %v327 = vrot.slane %v326, 2
  %v328 = vadd.f32 %v326, %v327
  %v329 = vrot.slane %v328, 1
  %v330 = vadd.f32 %v328, %v329
  %v331 = vmax.f32 %v330, 1e-09
  %v332 = vrcp.pop %v331
  %v333 = vmul.f32 %v331, %v332
  %v334 = vsub.f32 1.0, %v333
  %v335 = vmul.f32 %v332, %v334
  %v336 = vadd.f32 %v332, %v335
  %vm337 = vweird.f32 %v331
  %vm338 = vweird.f32 %v332
  %vm339 = vmor %vm337, %vm338
  %v340 = vsel %vm339, %v332, %v336
  %v341 = vand.u32 2147483647, %v331
  %vm342 = vcmp.eq.f32.partialorder %v341, 8.507059e+37
  %v343 = vand.u32 %v331, 2147483648
  %v344 = vor.u32 1.1754944e-38, %v343
  %v345 = vsel %vm342, %v344, %v340
  %v346 = vmul.f32 %v269, %v345
  %v347 = vmul.f32 %v321, %v345
  %v348 = vlaneseq
  %v349 = vshrl.u32 %v348, 7
  %vm350 = vcmp.eq.s32.totalorder %v349, 0
  %vm351 = vcmp.eq.s32.totalorder %v19, 0
  %vm352 = vmand %vm350, %vm351
  %354 = vset.pattern.permute.xlu0 3
  %355 = vperm.xlu0 %354, %v346
  %v356 = vpop.permute.xlu0 %355
  %v358 = vsel %vm352, %v356, 0.0
  %vm359 = vcmp.eq.s32.totalorder %v19, 1
  %vm360 = vmand %vm350, %vm359
  %362 = vset.pattern.permute.xlu0 3
  %363 = vperm.xlu0 %362, %v347
  %v364 = vpop.permute.xlu0 %363
  %v366 = vsel %vm360, %v364, 0.0
  %v367 = vadd.f32 %v358, %v366
  %368 = vst [vmem:[%s3 + $0x10] sm:$0xff] %v367
  // Predicated region
  $region14: #{joint_model_forward.1} parent=0 // pred_check
    _
  $region15: #{joint_model_forward.1} parent=0 // pred_check_branch
    %370 = sbr.rel (0) target = $region17
  $region16: #{joint_model_forward.1} parent=0 // pred_region
    _
  $region17: #{joint_model_forward.1} parent=0 // pred_fallthru
    _
  // Predicated region
  $region18: #{joint_model_forward.1} parent=0 // pred_check
    _
  $region19: #{joint_model_forward.1} parent=0 // pred_check_branch
    %372 = sbr.rel (0) target = $region21
  $region20: #{joint_model_forward.1} parent=0 // pred_region
    _
  $region21: #{joint_model_forward.1} parent=0 // pred_fallthru
    _

</llo_original>
